<compile_context>
chip_gen: v5e
topology: v5e:2x2
jax: 0.10.0
libtpu: 0.0.40
codegen_flags: <defaults>
</compile_context>

<pallas_src>
import functools

import jax
import jax.numpy as jnp
from jax.experimental import pallas as pl
from jax.experimental.pallas import tpu as pltpu


def sobel_kernel(x_ref, o_ref, *, H, W, tb):
    Ho, Wo = H - 2, W - 2
    x = x_ref[...]                               # (tb*H, W) f32 slab of whole images
    R = x.shape[0]

    # Rows i+1 / i+2 aligned at row i (circular; wrap rows land only in each
    # image's last 2 rows, which are never stored).
    x_d1 = pltpu.roll(x, R - 1, axis=0)          # x[i+1, :]
    x_d2 = pltpu.roll(x, R - 2, axis=0)          # x[i+2, :]
    s = x + 2.0 * x_d1 + x_d2                    # vertical [1, 2, 1]
    d = x - x_d2                                 # vertical [1, 0, -1]

    # Cols j+1 / j+2 aligned at col j (wrap cols land only in each image's
    # last 2 columns, never stored).
    gx = s - pltpu.roll(s, W - 2, axis=1)        # horizontal [1, 0, -1]
    gy = (d
          + 2.0 * pltpu.roll(d, W - 1, axis=1)
          + pltpu.roll(d, W - 2, axis=1))        # horizontal [1, 2, 1]

    # Common factor 2 from the separable factorization of Gx / Gy.
    mag = 2.0 * jnp.sqrt(gx * gx + gy * gy)

    # Row + column compaction in-kernel: only each image's valid (Ho, Wo)
    # window is written -> no post-kernel crop pass.
    for k in range(tb):
        o_ref[k * Ho:(k + 1) * Ho, :] = mag[k * H:k * H + Ho, :Wo].astype(o_ref.dtype)


def _pick_images_per_block(N, H, W, vmem_budget_bytes, max_unroll=64):
    """Whole images per grid step, sized against *total live* VMEM.

    Live VMEM per step ~= double-buffered in/out blocks + ~6-8 full-size f32
    temporaries (roll outputs, s, d, gx, gy, mag) ~= 10x the block bytes.
    Constraints: (tb*H) and (tb*(H-2)) must be multiples of 8 unless the block
    spans the full batch; prefer tb | N so the tail block is full.
    """
    Ho = H - 2
    live_bytes_per_image = 10 * H * W * 4
    cap = max(1, int(vmem_budget_bytes) // live_bytes_per_image)
    cap = min(cap, N, max_unroll)

    def rows_ok(tb):
        return tb == N or ((tb * H) % 8 == 0 and (tb * Ho) % 8 == 0)

    if cap >= N:
        # Whole batch fits in one block.  Split in two (v7x megacore) only if
        # each half still has >= 512 sublane rows; otherwise keep one big block.
        half = N // 2
        if N % 2 == 0 and half * H >= 512 and rows_ok(half):
            return half
        # TODO(synk): for N == 1 (or one huge image) split rows within the image
        # across the grid with a 2-row halo so both v7x TensorCores are used.
        return N

    best_nondiv = None
    for tb in range(cap, 0, -1):
        if not rows_ok(tb):
            continue
        if N % tb == 0:
            return tb
        if best_nondiv is None:
            best_nondiv = tb
    if best_nondiv is not None:
        return best_nondiv
    # No 8-aligned tb fits the soft budget (odd H with a tiny budget): take the
    # smallest always-aligned block; the explicit vmem_limit leaves headroom.
    return min(8, N)


def sobel(img, *, vmem_budget_bytes=6 * 1024 * 1024):
    """img: (N, 1, H, W) float32 -> (N, 1, H-2, W-2) float32."""
    N, C, H, W = img.shape
    assert C == 1, "Sobel module expects a single input channel"
    assert H >= 3 and W >= 3, "valid 3x3 conv needs H, W >= 3"
    assert img.dtype == jnp.float32, "Sobel module runs in float32"
    Ho, Wo = H - 2, W - 2

    # Flatten batch + rows into one lane-dense 2-D slab (rows contiguous in HBM).
    # TODO(synk): for W far below 128, pack several images along the lane axis
    # (g*W ~ multiple of 128) to raise lane utilization; needs layout plumbing
    # on both sides, so skipped here.
    x2d = img.reshape(N * H, W)

    tb = _pick_images_per_block(N, H, W, vmem_budget_bytes)
    grid_n = pl.cdiv(N, tb)

    out2d = pl.pallas_call(
        functools.partial(sobel_kernel, H=H, W=W, tb=tb),
        out_shape=jax.ShapeDtypeStruct((N * Ho, Wo), img.dtype),
        grid_spec=pltpu.PrefetchScalarGridSpec(
            num_scalar_prefetch=0,
            grid=(grid_n,),
            in_specs=[pl.BlockSpec((tb * H, W), lambda n: (n, 0))],
            out_specs=pl.BlockSpec((tb * Ho, Wo), lambda n: (n, 0)),
        ),
        compiler_params=pltpu.CompilerParams(
            dimension_semantics=("parallel",),
            # Explicit scoped-VMEM limit: >= default on every generation
            # (v5e default is only 16 MiB) and <= v7x physical 64 MiB; the
            # budget above keeps real live bytes well under it.
            vmem_limit_bytes=32 * 1024 * 1024,
        ),
    )(x2d)

    # Pure-metadata reshape: the kernel already wrote the exact cropped output.
    return out2d.reshape(N, 1, Ho, Wo)


def sobel_ref(img):
    """Plain-JAX reference mirroring the PyTorch forward (cross-correlation)."""
    x = img[:, 0, :, :]
    gx = (2.0 * (x[:, 0:-2, 0:-2] - x[:, 0:-2, 2:]) +
          4.0 * (x[:, 1:-1, 0:-2] - x[:, 1:-1, 2:]) +
          2.0 * (x[:, 2:, 0:-2] - x[:, 2:, 2:]))
    gy = (2.0 * x[:, 0:-2, 0:-2] + 4.0 * x[:, 0:-2, 1:-1] + 2.0 * x[:, 0:-2, 2:]
          - 2.0 * x[:, 2:, 0:-2] - 4.0 * x[:, 2:, 1:-1] - 2.0 * x[:, 2:, 2:])
    return jnp.sqrt(gx * gx + gy * gy)[:, None, :, :]


if __name__ == "__main__":
    key = jax.random.PRNGKey(0)

    # Small NCHW input consistent with the module: batch=2, 1 channel, 16x16.
    img = jax.random.normal(key, (2, 1, 16, 16), dtype=jnp.float32)
    out = jax.block_until_ready(sobel(img))
    ref = sobel_ref(img)
    assert out.shape == (2, 1, 14, 14), out.shape
    assert jnp.allclose(out, ref, atol=1e-4, rtol=1e-4), "mismatch vs reference (case 1)"

    # Second case exercising the multi-block path (grid > 1, tail-free tb | N,
    # unaligned-row compaction stores) with a deliberately small VMEM budget.
    key2 = jax.random.PRNGKey(1)
    img2 = jax.random.normal(key2, (16, 1, 16, 128), dtype=jnp.float32)
    out2 = jax.block_until_ready(sobel(img2, vmem_budget_bytes=256 * 1024))
    ref2 = sobel_ref(img2)
    assert out2.shape == (16, 1, 14, 126), out2.shape
    assert jnp.allclose(out2, ref2, atol=1e-4, rtol=1e-4), "mismatch vs reference (case 2)"

    print("KERNEL_OK")
</pallas_src>

<mosaic_0001>
module attributes {stable_mosaic.version = 11 : i64} {
  func.func @sobel_kernel(%arg0: i32, %arg1: memref<32x16xf32, #tpu.memory_space<vmem>>, %arg2: memref<28x14xf32, #tpu.memory_space<vmem>>) attributes {dimension_semantics = [#tpu.dimension_semantics<parallel>], iteration_bounds = array<i64: 1>, scalar_prefetch = 0 : i64, scratch_operands = 0 : i64, tpu.core_type = #tpu.core_type<tc>, window_params = [{transform_indices = @transform_0, window_bounds = array<i64: 32, 16>}, {transform_indices = @transform_1, window_bounds = array<i64: 28, 14>}]} {
    %c0 = arith.constant 0 : index
    %c0_0 = arith.constant 0 : index
    %0 = vector.load %arg1[%c0, %c0_0] : memref<32x16xf32, #tpu.memory_space<vmem>>, vector<32x16xf32>
    %c31_i32 = arith.constant 31 : i32
    %1 = tpu.dynamic_rotate %0 by %c31_i32 dim 0 : vector<32x16xf32>, i32 -> vector<32x16xf32>
    %c30_i32 = arith.constant 30 : i32
    %2 = tpu.dynamic_rotate %0 by %c30_i32 dim 0 : vector<32x16xf32>, i32 -> vector<32x16xf32>
    %cst = arith.constant 2.000000e+00 : f32
    %3 = vector.broadcast %cst : f32 to vector<32x16xf32>
    %4 = arith.mulf %3, %1 : vector<32x16xf32>
    %5 = arith.addf %0, %4 : vector<32x16xf32>
    %6 = arith.addf %5, %2 : vector<32x16xf32>
    %7 = arith.subf %0, %2 : vector<32x16xf32>
    %c14_i32 = arith.constant 14 : i32
    %8 = tpu.dynamic_rotate %6 by %c14_i32 dim 1 : vector<32x16xf32>, i32 -> vector<32x16xf32>
    %9 = arith.subf %6, %8 : vector<32x16xf32>
    %c15_i32 = arith.constant 15 : i32
    %10 = tpu.dynamic_rotate %7 by %c15_i32 dim 1 : vector<32x16xf32>, i32 -> vector<32x16xf32>
    %cst_1 = arith.constant 2.000000e+00 : f32
    %11 = vector.broadcast %cst_1 : f32 to vector<32x16xf32>
    %12 = arith.mulf %11, %10 : vector<32x16xf32>
    %13 = arith.addf %7, %12 : vector<32x16xf32>
    %c14_i32_2 = arith.constant 14 : i32
    %14 = tpu.dynamic_rotate %7 by %c14_i32_2 dim 1 : vector<32x16xf32>, i32 -> vector<32x16xf32>
    %15 = arith.addf %13, %14 : vector<32x16xf32>
    %16 = arith.mulf %9, %9 : vector<32x16xf32>
    %17 = arith.mulf %15, %15 : vector<32x16xf32>
    %18 = arith.addf %16, %17 : vector<32x16xf32>
    %19 = math.sqrt %18 : vector<32x16xf32>
    %cst_3 = arith.constant 2.000000e+00 : f32
    %20 = vector.broadcast %cst_3 : f32 to vector<32x16xf32>
    %21 = arith.mulf %20, %19 : vector<32x16xf32>
    %22 = vector.extract_strided_slice %21 {offsets = [0, 0], sizes = [14, 14], strides = [1, 1]} : vector<32x16xf32> to vector<14x14xf32>
    %c0_4 = arith.constant 0 : index
    %c0_5 = arith.constant 0 : index
    %23 = vector.load %arg2[%c0_4, %c0_5] : memref<28x14xf32, #tpu.memory_space<vmem>>, vector<14x14xf32>
    tpu.vector_store %arg2[%c0_4, %c0_5], %22 {strides = array<i32>} : memref<28x14xf32, #tpu.memory_space<vmem>>, vector<14x14xf32>,
    %24 = vector.extract_strided_slice %21 {offsets = [16, 0], sizes = [14, 14], strides = [1, 1]} : vector<32x16xf32> to vector<14x14xf32>
    %c14 = arith.constant 14 : index
    %c0_6 = arith.constant 0 : index
    %25 = vector.load %arg2[%c14, %c0_6] : memref<28x14xf32, #tpu.memory_space<vmem>>, vector<14x14xf32>
    tpu.vector_store %arg2[%c14, %c0_6], %24 {strides = array<i32>} : memref<28x14xf32, #tpu.memory_space<vmem>>, vector<14x14xf32>,
    return
  }
  func.func @transform_0(%arg0: i32) -> (i32, i32) {
    %c0_i32 = arith.constant 0 : i32
    %c0_i32_0 = arith.constant 0 : i32
    return %arg0, %c0_i32 : i32, i32
  }
  func.func @transform_1(%arg0: i32) -> (i32, i32) {
    %c0_i32 = arith.constant 0 : i32
    %c0_i32_0 = arith.constant 0 : i32
    return %arg0, %c0_i32 : i32, i32
  }
}

</mosaic_0001>

<llo_original>
// kernel: tpu_custom_call.1
$region0: #{tpu_custom_call.1}
  #allocation0 [shape = 'u32[]', space=smem, size = 0x4, offset = 0x4, fixed_abs, tag = 'smem constant byte address 0x4 - core index']
  #allocation1 [shape = 'u32[72,128]{1,0:T(1,128)}', space=vmem, size = 0x9000, scoped, tag = 'internal scratch']
  %s0 = inlined_call_operand.vmem [shape: f32[32,16], index: 0, kind: input, shape index: {}]
  %s1 = inlined_call_operand.vmem [shape: f32[28,14], index: 1, kind: output, shape index: {}]
  %s2 = sld [smem:[#allocation0]]
  $region14: #{tpu_custom_call.1} parent=0
    _
  %s4 = ssub.s32 1, %s2
  %s5 = scalar_select 0, %s4, %s2
  // Predicated region
  $region2: #{tpu_custom_call.1} parent=0 // pred_check
    _
  $region3: #{tpu_custom_call.1} parent=0 // pred_check_branch
    %7 = sbr.rel (0) target = $region5
  $region4: #{tpu_custom_call.1} parent=0 // pred_region
    _
  $region5: #{tpu_custom_call.1} parent=0 // pred_fallthru
    _
  %v8 = vld [vmem:[%s0] sm:$0xff]
  %v9 = vld [vmem:[%s0 + $0x8] sm:$0xff]
  %v10 = vld [vmem:[%s0 + $0x10] sm:$0xff]
  %v11 = vld [vmem:[%s0 + $0x18] sm:$0xff]
  %v12 = vrot.slane %v8, 1
  %v13 = vrot.slane %v9, 1
  %v14 = vrot.slane %v10, 1
  %v15 = vrot.slane %v11, 1
  %v16 = vlaneseq
  %v17 = vshrl.u32 %v16, 7
  %vm18 = vcmp.lt.s32.totalorder %v17, 7
  %v19 = vsel %vm18, %v14, %v15
  %v20 = vsel %vm18, %v13, %v14
  %v21 = vsel %vm18, %v12, %v13
  %v22 = vsel %vm18, %v15, %v12
  %v23 = vrot.slane %v8, 2
  %v24 = vrot.slane %v9, 2
  %v25 = vrot.slane %v10, 2
  %v26 = vrot.slane %v11, 2
  %vm27 = vcmp.lt.s32.totalorder %v17, 6
  %v28 = vsel %vm27, %v25, %v26
  %v29 = vsel %vm27, %v24, %v25
  %v30 = vsel %vm27, %v23, %v24
  %v31 = vsel %vm27, %v26, %v23
  %v32 = vmul.f32 %v21, 2.0
  %v33 = vmul.f32 %v20, 2.0
  %v34 = vmul.f32 %v19, 2.0
  %v35 = vmul.f32 %v22, 2.0
  %v36 = vadd.f32 %v8, %v32
  %v37 = vadd.f32 %v9, %v33
  %v38 = vadd.f32 %v10, %v34
  %v39 = vadd.f32 %v11, %v35
  %v40 = vadd.f32 %v36, %v30
  %v41 = vadd.f32 %v37, %v29
  %v42 = vadd.f32 %v38, %v28
  %v43 = vadd.f32 %v39, %v31
  %v44 = vsub.f32 %v8, %v30
  %v45 = vsub.f32 %v9, %v29
  %v46 = vsub.f32 %v10, %v28
  %v47 = vsub.f32 %v11, %v31
  %vm48 = vcmask 1047680
  %49 = vrot.lane.b32.xlu0 %v40, 16
  %v50 = vpop.permute.xlu0 %49
  %v51 = vsel %vm48, %v50, %v40
  %52 = vrot.lane.b32.xlu0 %v41, 16
  %v53 = vpop.permute.xlu0 %52
  %v54 = vsel %vm48, %v53, %v41
  %55 = vrot.lane.b32.xlu0 %v42, 16
  %v56 = vpop.permute.xlu0 %55
  %v57 = vsel %vm48, %v56, %v42
  %58 = vrot.lane.b32.xlu0 %v43, 16
  %v59 = vpop.permute.xlu0 %58
  %v60 = vsel %vm48, %v59, %v43
  %61 = vrot.lane.b32.xlu0 %v51, 16
  %v62 = vpop.permute.xlu0 %61
  %63 = vrot.lane.b32.xlu0 %v54, 16
  %v64 = vpop.permute.xlu0 %63
  %65 = vrot.lane.b32.xlu0 %v57, 16
  %v66 = vpop.permute.xlu0 %65
  %67 = vrot.lane.b32.xlu0 %v60, 16
  %v68 = vpop.permute.xlu0 %67
  %v69 = vsel %vm48, %v62, %v40
  %v70 = vsel %vm48, %v64, %v41
  %v71 = vsel %vm48, %v66, %v42
  %v72 = vsel %vm48, %v68, %v43
  %77 = vrot.lane.b32.xlu0 %v69, 126
  %v78 = vpop.permute.xlu0 %77
  %79 = vrot.lane.b32.xlu0 %v70, 126
  %v80 = vpop.permute.xlu0 %79
  %81 = vrot.lane.b32.xlu0 %v71, 126
  %v82 = vpop.permute.xlu0 %81
  %83 = vrot.lane.b32.xlu0 %v72, 126
  %v84 = vpop.permute.xlu0 %83
  %v89 = vsub.f32 %v40, %v78
  %v90 = vsub.f32 %v41, %v80
  %v91 = vsub.f32 %v42, %v82
  %v92 = vsub.f32 %v43, %v84
  %93 = vrot.lane.b32.xlu0 %v44, 16
  %v94 = vpop.permute.xlu0 %93
  %v95 = vsel %vm48, %v94, %v44
  %96 = vrot.lane.b32.xlu0 %v45, 16
  %v97 = vpop.permute.xlu0 %96
  %v98 = vsel %vm48, %v97, %v45
  %99 = vrot.lane.b32.xlu0 %v46, 16
  %v100 = vpop.permute.xlu0 %99
  %v101 = vsel %vm48, %v100, %v46
  %102 = vrot.lane.b32.xlu0 %v47, 16
  %v103 = vpop.permute.xlu0 %102
  %v104 = vsel %vm48, %v103, %v47
  %105 = vrot.lane.b32.xlu0 %v95, 16
  %v106 = vpop.permute.xlu0 %105
  %107 = vrot.lane.b32.xlu0 %v98, 16
  %v108 = vpop.permute.xlu0 %107
  %109 = vrot.lane.b32.xlu0 %v101, 16
  %v110 = vpop.permute.xlu0 %109
  %111 = vrot.lane.b32.xlu0 %v104, 16
  %v112 = vpop.permute.xlu0 %111
  %v113 = vsel %vm48, %v106, %v44
  %v114 = vsel %vm48, %v108, %v45
  %v115 = vsel %vm48, %v110, %v46
  %v116 = vsel %vm48, %v112, %v47
  %v117 = vmul.f32 %v113, 2.0
  %v118 = vmul.f32 %v114, 2.0
  %v119 = vmul.f32 %v115, 2.0
  %v120 = vmul.f32 %v116, 2.0
  %125 = vrot.lane.b32.xlu0 %v117, 127
  %v126 = vpop.permute.xlu0 %125
  %127 = vrot.lane.b32.xlu0 %v118, 127
  %v128 = vpop.permute.xlu0 %127
  %129 = vrot.lane.b32.xlu0 %v119, 127
  %v130 = vpop.permute.xlu0 %129
  %131 = vrot.lane.b32.xlu0 %v120, 127
  %v132 = vpop.permute.xlu0 %131
  %v137 = vadd.f32 %v44, %v126
  %v138 = vadd.f32 %v45, %v128
  %v139 = vadd.f32 %v46, %v130
  %v140 = vadd.f32 %v47, %v132
  %145 = vrot.lane.b32.xlu0 %v113, 126
  %v146 = vpop.permute.xlu0 %145
  %147 = vrot.lane.b32.xlu0 %v114, 126
  %v148 = vpop.permute.xlu0 %147
  %149 = vrot.lane.b32.xlu0 %v115, 126
  %v150 = vpop.permute.xlu0 %149
  %151 = vrot.lane.b32.xlu0 %v116, 126
  %v152 = vpop.permute.xlu0 %151
  %v157 = vadd.f32 %v137, %v146
  %v158 = vadd.f32 %v138, %v148
  %v159 = vadd.f32 %v139, %v150
  %v160 = vadd.f32 %v140, %v152
  %v161 = vmul.f32 %v89, %v89
  %v162 = vmul.f32 %v90, %v90
  %v163 = vmul.f32 %v91, %v91
  %v164 = vmul.f32 %v92, %v92
  %v165 = vmul.f32 %v157, %v157
  %v166 = vmul.f32 %v158, %v158
  %v167 = vmul.f32 %v159, %v159
  %v168 = vmul.f32 %v160, %v160
  %v169 = vadd.f32 %v161, %v165
  %v170 = vadd.f32 %v162, %v166
  %v171 = vadd.f32 %v163, %v167
  %v172 = vadd.f32 %v164, %v168
  %v173 = vrsqrt.pop %v169
  %v174 = vmul.f32 %v173, %v169
  %v175 = vmul.f32 %v174, %v173
  %v176 = vmul.f32 0.5, %v175
  %v177 = vsub.f32 1.5, %v176
  %v178 = vmul.f32 %v173, %v177
  %v179 = vmul.f32 %v169, %v178
  %vm180 = vcmp.eq.f32.partialorder %v169, inf
  %v181 = vsel %vm180, %v169, %v179
  %vm182 = vcmp.eq.f32.partialorder %v169, 0.0
  %v183 = vand.u32 %v169, 2147483648
  %v184 = vsel %vm182, %v183, %v181
  %v185 = vrsqrt.pop %v170
  %v186 = vmul.f32 %v185, %v170
  %v187 = vmul.f32 %v186, %v185
  %v188 = vmul.f32 0.5, %v187
  %v189 = vsub.f32 1.5, %v188
  %v190 = vmul.f32 %v185, %v189
  %v191 = vmul.f32 %v170, %v190
  %vm192 = vcmp.eq.f32.partialorder %v170, inf
  %v193 = vsel %vm192, %v170, %v191
  %vm194 = vcmp.eq.f32.partialorder %v170, 0.0
  %v195 = vand.u32 %v170, 2147483648
  %v196 = vsel %vm194, %v195, %v193
  %v197 = vrsqrt.pop %v171
  %v198 = vmul.f32 %v197, %v171
  %v199 = vmul.f32 %v198, %v197
  %v200 = vmul.f32 0.5, %v199
  %v201 = vsub.f32 1.5, %v200
  %v202 = vmul.f32 %v197, %v201
  %v203 = vmul.f32 %v171, %v202
  %vm204 = vcmp.eq.f32.partialorder %v171, inf
  %v205 = vsel %vm204, %v171, %v203
  %vm206 = vcmp.eq.f32.partialorder %v171, 0.0
  %v207 = vand.u32 %v171, 2147483648
  %v208 = vsel %vm206, %v207, %v205
  %v209 = vrsqrt.pop %v172
  %v210 = vmul.f32 %v209, %v172
  %v211 = vmul.f32 %v210, %v209
  %v212 = vmul.f32 0.5, %v211
  %v213 = vsub.f32 1.5, %v212
  %v214 = vmul.f32 %v209, %v213
  %v215 = vmul.f32 %v172, %v214
  %vm216 = vcmp.eq.f32.partialorder %v172, inf
  %v217 = vsel %vm216, %v172, %v215
  %vm218 = vcmp.eq.f32.partialorder %v172, 0.0
  %v219 = vand.u32 %v172, 2147483648
  %v220 = vsel %vm218, %v219, %v217
  %v221 = vmul.f32 %v184, 2.0
  %v222 = vmul.f32 %v196, 2.0
  %v223 = vmul.f32 %v208, 2.0
  %v224 = vmul.f32 %v220, 2.0
  %vm225 = vcmask 113664
  %226 = vst.msk [vmem:[%s1] sm:$0xff] %vm225, %v221
  %vm227 = vcmask 111616
  %228 = vst.msk [vmem:[%s1 + $0x8] sm:$0x3f] %vm227, %v222
  %229 = vst.msk [vmem:[%s1 + $0xe] sm:$0xff] %vm225, %v223
  %230 = vst.msk [vmem:[%s1 + $0x16] sm:$0x3f] %vm227, %v224
  // Predicated region
  $region6: #{tpu_custom_call.1} parent=0 // pred_check
    _
  $region7: #{tpu_custom_call.1} parent=0 // pred_check_branch
    %232 = sbr.rel (0) target = $region9
  $region8: #{tpu_custom_call.1} parent=0 // pred_region
    _
  $region9: #{tpu_custom_call.1} parent=0 // pred_fallthru
    _
  // Predicated region
  $region10: #{tpu_custom_call.1} parent=0 // pred_check
    _
  $region11: #{tpu_custom_call.1} parent=0 // pred_check_branch
    %234 = sbr.rel (0) target = $region13
  $region12: #{tpu_custom_call.1} parent=0 // pred_region
    _
  $region13: #{tpu_custom_call.1} parent=0 // pred_fallthru
    _

</llo_original>
